<compile_context>
chip_gen: v5e
topology: v5e:2x2
jax: 0.10.0
libtpu: 0.0.40
codegen_flags: <defaults>
</compile_context>

<pallas_src>
from collections import namedtuple

import jax
import jax.numpy as jnp
from jax.experimental import pallas as pl
from jax.experimental.pallas import tpu as pltpu

Genotype = namedtuple("Genotype", "normal normal_concat reduce reduce_concat")

GENOTYPE = Genotype(
    normal=[
        (("nor_conv_1x1", 0), ("skip_connect", 1)),
        (("nor_conv_1x1", 1), ("skip_connect", 0)),
        (("skip_connect", 2), ("nor_conv_1x1", 3)),
        (("nor_conv_1x1", 0), ("skip_connect", 2)),
    ],
    normal_concat=[2, 3, 4, 5],
    reduce=[],
    reduce_concat=[],
)

BN_EPS = 1e-5


# ---------------------------------------------------------------------------
# Fused cell kernel (built from the static genotype plan)
# ---------------------------------------------------------------------------
def _make_cell_kernel(plan, concat, groups, group_start, C):
    """plan: per step, two (name, src_idx, packed_conv_pos|None) tuples.
    groups: src_idx -> list of packed conv positions (contiguous)."""
    concat_pos = {idx: k for k, idx in enumerate(concat)}
    use_slice_store = (C % 8) == 0  # unmasked sublane stores only when aligned

    def kernel(x0_ref, x1_ref, wpre_ref, bpre_ref, wstep_ref, bstep_ref, out_ref):
        conv_out = {}
        pending = {}

        def emit(idx, value):
            k = concat_pos.get(idx)
            if k is None:
                return
            if use_slice_store:
                # store as soon as the state is final (no concat temporary)
                out_ref[k * C:(k + 1) * C, :] = value.astype(out_ref.dtype)
            else:
                pending[k] = value

        def run_group(src_idx, state_f32):
            # All 1x1 convs reading this state share one stacked MXU dot.
            g = groups.get(src_idx)
            if not g:
                return
            s, n = group_start[src_idx], len(g)
            wg = wstep_ref[s * C:(s + n) * C, :]          # (n*C, C) bf16
            bg = bstep_ref[s * C:(s + n) * C, :]          # (n*C, 1) f32
            xb = jnp.maximum(state_f32, 0.0).astype(jnp.bfloat16)
            y = jnp.dot(wg, xb, preferred_element_type=jnp.float32) + bg
            for k, pos in enumerate(g):
                conv_out[pos] = y[k * C:(k + 1) * C, :]

        # ---- fused preprocess0/1: one block-diagonal (2C, Cpp+Cp) dot ----
        xin = jnp.concatenate(
            [jnp.maximum(x0_ref[...], 0.0), jnp.maximum(x1_ref[...], 0.0)],
            axis=0).astype(jnp.bfloat16)
        pre = jnp.dot(wpre_ref[...], xin,
                      preferred_element_type=jnp.float32) + bpre_ref[...]
        states = [pre[:C, :], pre[C:2 * C, :]]
        emit(0, states[0]); emit(1, states[1])
        run_group(0, states[0]); run_group(1, states[1])

        # ---- cell steps (skip_connect = identity; eval => drop_path no-op) ----
        for (name1, idx1, pos1), (name2, idx2, pos2) in plan:
            h1 = conv_out[pos1] if name1 == "nor_conv_1x1" else states[idx1]
            h2 = conv_out[pos2] if name2 == "nor_conv_1x1" else states[idx2]
            new = h1 + h2
            new_idx = len(states)
            states.append(new)
            emit(new_idx, new)
            run_group(new_idx, new)

        if not use_slice_store:
            out_ref[...] = jnp.concatenate(
                [pending[k] for k in range(len(concat))],
                axis=0).astype(out_ref.dtype)

    return kernel


# ---------------------------------------------------------------------------
# Parameter construction (deterministic, synthetic; BN folded into weights)
# ---------------------------------------------------------------------------
def make_relu_conv_bn_params(key, c_in, c_out):
    k_w, k_g, k_b, k_m, k_v = jax.random.split(key, 5)
    w = jax.random.normal(k_w, (c_in, c_out), jnp.float32) * 0.1
    gamma = 1.0 + 0.1 * jax.random.normal(k_g, (c_out,), jnp.float32)
    beta = 0.1 * jax.random.normal(k_b, (c_out,), jnp.float32)
    running_mean = 0.1 * jax.random.normal(k_m, (c_out,), jnp.float32)
    running_var = jnp.abs(jax.random.normal(k_v, (c_out,), jnp.float32)) + 0.5
    scale = gamma / jnp.sqrt(running_var + BN_EPS)
    bias = beta - running_mean * scale
    # Fold BN scale into the conv weight; store as (Cout, Cin) for the
    # channel-major layout (matmul outputs lane-dense along the pixel dim).
    wt = (w * scale[None, :]).T
    return {"wt": wt, "b": bias[:, None]}


def build_infer_cell(genotype, C_prev_prev, C_prev, C, reduction, reduction_prev, key):
    assert reduction is False and reduction_prev is False  # config exercised here
    step_ops = genotype.normal
    concat = tuple(genotype.normal_concat)

    n_step_conv = sum(1 for ops in step_ops for (name, _) in ops
                      if name == "nor_conv_1x1")
    keys = jax.random.split(key, 2 + n_step_conv)

    pre0 = make_relu_conv_bn_params(keys[0], C_prev_prev, C)   # preprocess0
    pre1 = make_relu_conv_bn_params(keys[1], C_prev, C)        # preprocess1

    step_convs = []   # encounter order: (src_idx, params)
    raw_plan = []     # per step: (name, src_idx, encounter_seq|None) x 2
    kidx = 2
    for operations in step_ops:
        sp = []
        for name, index in operations:
            if name == "nor_conv_1x1":
                p = make_relu_conv_bn_params(keys[kidx], C, C)
                kidx += 1
                sp.append((name, index, len(step_convs)))
                step_convs.append((index, p))
            elif name == "skip_connect":
                sp.append((name, index, None))
            else:
                # TODO(synk): other genotype ops (sep/dil conv, pooling,
                # FactorizedReduce) not used by this synthetic genotype.
                raise NotImplementedError(name)
        raw_plan.append(tuple(sp))

    # Group step convs by their source state so convs sharing an input share
    # one stacked MXU dot; pack weights group-contiguously as (n_sc*C, C).
    groups_by_src = {}
    for seq, (src, _) in enumerate(step_convs):
        groups_by_src.setdefault(src, []).append(seq)
    seq_to_pos, packed_order = {}, []
    for src in sorted(groups_by_src):
        for seq in groups_by_src[src]:
            seq_to_pos[seq] = len(packed_order)
            packed_order.append(seq)
    groups, group_start, cursor = {}, {}, 0
    for src in sorted(groups_by_src):
        members = [seq_to_pos[s] for s in groups_by_src[src]]
        groups[src] = members
        group_start[src] = cursor
        cursor += len(members)

    plan = tuple(
        tuple((name, idx, seq_to_pos[seq] if seq is not None else None)
              for (name, idx, seq) in sp)
        for sp in raw_plan)

    # Fused preprocess weight: block-diagonal (2C, Cpp+Cp).
    wpre = jnp.zeros((2 * C, C_prev_prev + C_prev), jnp.float32)
    wpre = wpre.at[:C, :C_prev_prev].set(pre0["wt"])
    wpre = wpre.at[C:, C_prev_prev:].set(pre1["wt"])
    bpre = jnp.concatenate([pre0["b"], pre1["b"]], axis=0)

    wstep = jnp.concatenate([step_convs[s][1]["wt"] for s in packed_order], axis=0)
    bstep = jnp.concatenate([step_convs[s][1]["b"] for s in packed_order], axis=0)

    return {
        "wpre": wpre.astype(jnp.bfloat16), "bpre": bpre,
        "wstep": wstep.astype(jnp.bfloat16), "bstep": bstep,
        "plan": plan, "concat": concat,
        "groups": groups, "group_start": group_start, "C": C,
        # unfused per-conv params kept only for the pure-JAX reference
        "convs_ref": [pre0, pre1] + [p for (_, p) in step_convs],
        "plan_ref": tuple(raw_plan),
    }


# ---------------------------------------------------------------------------
# Tiling
# ---------------------------------------------------------------------------
def _pick_tile(HW, N, stream_rows):
    """Largest lane tile dividing H*W that still gives a few grid steps
    (>=4, ideally >=8, so both v7x TCs pipeline) and fits a conservative
    VMEM budget (well under v7x's 64 MiB physical)."""
    cands = [c for c in (2048, 1024, 512, 256, 128) if HW % c == 0]
    if not cands:
        # TODO(synk): ragged H*W (not a multiple of 128); fall back to one
        # full-width block per batch element (full-dim exception).
        return HW
    cands = [c for c in cands if 3 * stream_rows * c * 4 <= 40 * 1024 * 1024] \
        or [cands[-1]]
    for min_steps in (8, 4, 2):
        for c in cands:
            if N * (HW // c) >= min_steps:
                return c
    return cands[0]


# ---------------------------------------------------------------------------
# Forward pass (InferCell.forward equivalent, eval mode => drop_path no-op)
# ---------------------------------------------------------------------------
def infer_cell_forward(params, S0, S1, drop_prob=0.0, out_dtype=jnp.float32):
    del drop_prob  # inference mode: drop_path disabled (self.training == False)
    N, C_pp, H, W = S0.shape
    C_p = S1.shape[1]
    C = params["C"]
    HW = H * W
    n_out = C * len(params["concat"])

    tm = _pick_tile(HW, N, C_pp + C_p + n_out)

    # Free views only — no transpose / pad / slice HBM passes in the wrapper.
    x0 = S0.reshape(N, C_pp, HW)
    x1 = S1.reshape(N, C_p, HW)

    kernel = _make_cell_kernel(params["plan"], params["concat"],
                               params["groups"], params["group_start"], C)

    def resident(shape):  # tiny weights stay in VMEM across the whole grid
        return pl.BlockSpec(shape, lambda n, i: tuple(0 for _ in shape))

    in_specs = [
        pl.BlockSpec((None, C_pp, tm), lambda n, i: (n, 0, i)),
        pl.BlockSpec((None, C_p, tm), lambda n, i: (n, 0, i)),
        resident(params["wpre"].shape),
        resident(params["bpre"].shape),
        resident(params["wstep"].shape),
        resident(params["bstep"].shape),
    ]
    out_specs = pl.BlockSpec((None, n_out, tm), lambda n, i: (n, 0, i))

    # Explicit VMEM budget: double-buffered streams + live states + weights.
    stream = 2 * (C_pp + C_p + n_out) * tm * 4
    states_live = 8 * C * tm * 4
    weights = sum(int(params[k].size) * 4
                  for k in ("wpre", "bpre", "wstep", "bstep"))
    vmem_limit = int(min(64 * 1024 * 1024,
                         max(16 * 1024 * 1024,
                             2 * (stream + states_live + weights))))

    out = pl.pallas_call(
        kernel,
        out_shape=jax.ShapeDtypeStruct((N, n_out, HW), out_dtype),
        grid=(N, HW // tm),
        in_specs=in_specs,
        out_specs=out_specs,
        compiler_params=pltpu.CompilerParams(
            dimension_semantics=("parallel", "parallel"),
            vmem_limit_bytes=vmem_limit),
    )(x0, x1, params["wpre"], params["bpre"], params["wstep"], params["bstep"])

    return out.reshape(N, n_out, H, W)


# ---------------------------------------------------------------------------
# Pure-JAX reference (mirrors the kernel math: bf16 at the dot, f32 elsewhere)
# ---------------------------------------------------------------------------
def infer_cell_reference(params, S0, S1):
    N, C_pp, H, W = S0.shape
    convs = params["convs_ref"]

    def rcb(x, p):  # x: (N, Cin, HW)
        xb = jnp.maximum(x, 0.0).astype(jnp.bfloat16)
        w = p["wt"].astype(jnp.bfloat16)
        y = jnp.einsum("oc,ncm->nom", w, xb,
                       preferred_element_type=jnp.float32)
        return y + p["b"][None]

    x0 = S0.reshape(N, C_pp, H * W)
    x1 = S1.reshape(N, S1.shape[1], H * W)
    states = [rcb(x0, convs[0]), rcb(x1, convs[1])]
    for (n1, i1, s1), (n2, i2, s2) in params["plan_ref"]:
        h1 = rcb(states[i1], convs[2 + s1]) if n1 == "nor_conv_1x1" else states[i1]
        h2 = rcb(states[i2], convs[2 + s2]) if n2 == "nor_conv_1x1" else states[i2]
        states.append(h1 + h2)
    out = jnp.concatenate([states[i] for i in params["concat"]], axis=1)
    return out.reshape(N, -1, H, W)


if __name__ == "__main__":
    key = jax.random.PRNGKey(0)
    k0, k1, kp = jax.random.split(key, 3)

    N, C_prev_prev, C_prev, C, H, W = 2, 4, 4, 4, 16, 16
    S0 = jax.random.normal(k0, (N, C_prev_prev, H, W), jnp.float32)
    S1 = jax.random.normal(k1, (N, C_prev, H, W), jnp.float32)

    params = build_infer_cell(GENOTYPE, C_prev_prev, C_prev, C,
                              reduction=False, reduction_prev=False, key=kp)

    out = infer_cell_forward(params, S0, S1, drop_prob=0.0)
    out = jax.block_until_ready(out)

    ref = infer_cell_reference(params, S0, S1)
    assert out.shape == (N, C * len(GENOTYPE.normal_concat), H, W), out.shape
    err = float(jnp.max(jnp.abs(out - ref)))
    assert jnp.allclose(out, ref, atol=1e-3, rtol=1e-3), f"mismatch: {err}"

    print("KERNEL_OK")
</pallas_src>

<mosaic_0001>
module attributes {stable_mosaic.version = 11 : i64} {
  func.func @kernel(%arg0: i32, %arg1: i32, %arg2: memref<1x4x128xf32, #tpu.memory_space<vmem>>, %arg3: memref<1x4x128xf32, #tpu.memory_space<vmem>>, %arg4: memref<8x8xbf16, #tpu.memory_space<vmem>>, %arg5: memref<8x1xf32, #tpu.memory_space<vmem>>, %arg6: memref<16x4xbf16, #tpu.memory_space<vmem>>, %arg7: memref<16x1xf32, #tpu.memory_space<vmem>>, %arg8: memref<1x16x128xf32, #tpu.memory_space<vmem>>) attributes {dimension_semantics = [#tpu.dimension_semantics<parallel>, #tpu.dimension_semantics<parallel>], iteration_bounds = array<i64: 2, 2>, scalar_prefetch = 0 : i64, scratch_operands = 0 : i64, tpu.core_type = #tpu.core_type<tc>, window_params = [{transform_indices = @transform_0, window_bounds = array<i64: 1, 4, 128>}, {transform_indices = @transform_1, window_bounds = array<i64: 1, 4, 128>}, {pipeline_mode = #tpu.pipeline_mode<synchronous>, transform_indices = @transform_2, window_bounds = array<i64: 8, 8>}, {pipeline_mode = #tpu.pipeline_mode<synchronous>, transform_indices = @transform_3, window_bounds = array<i64: 8, 1>}, {pipeline_mode = #tpu.pipeline_mode<synchronous>, transform_indices = @transform_4, window_bounds = array<i64: 16, 4>}, {pipeline_mode = #tpu.pipeline_mode<synchronous>, transform_indices = @transform_5, window_bounds = array<i64: 16, 1>}, {transform_indices = @transform_6, window_bounds = array<i64: 1, 16, 128>}]} {
    %c0 = arith.constant 0 : index
    %c0_0 = arith.constant 0 : index
    %c0_1 = arith.constant 0 : index
    %0 = vector.load %arg2[%c0, %c0_0, %c0_1] : memref<1x4x128xf32, #tpu.memory_space<vmem>>, vector<1x4x128xf32>
    %1 = vector.shape_cast %0 : vector<1x4x128xf32> to vector<4x128xf32>
    %cst = arith.constant 0.000000e+00 : f32
    %2 = vector.broadcast %cst : f32 to vector<4x128xf32>
    %3 = arith.maximumf %1, %2 : vector<4x128xf32>
    %c0_2 = arith.constant 0 : index
    %c0_3 = arith.constant 0 : index
    %c0_4 = arith.constant 0 : index
    %4 = vector.load %arg3[%c0_2, %c0_3, %c0_4] : memref<1x4x128xf32, #tpu.memory_space<vmem>>, vector<1x4x128xf32>
    %5 = vector.shape_cast %4 : vector<1x4x128xf32> to vector<4x128xf32>
    %cst_5 = arith.constant 0.000000e+00 : f32
    %6 = vector.broadcast %cst_5 : f32 to vector<4x128xf32>
    %7 = arith.maximumf %5, %6 : vector<4x128xf32>
    %8 = tpu.concatenate %3, %7 in 0 : vector<4x128xf32>, vector<4x128xf32> -> vector<8x128xf32>
    %9 = arith.truncf %8 : vector<8x128xf32> to vector<8x128xbf16>
    %c0_6 = arith.constant 0 : index
    %c0_7 = arith.constant 0 : index
    %10 = vector.load %arg4[%c0_6, %c0_7] : memref<8x8xbf16, #tpu.memory_space<vmem>>, vector<8x8xbf16>
    %cst_8 = arith.constant dense<0.000000e+00> : vector<8x128xf32>
    %11 = tpu.matmul %10, %9, %cst_8 {dimension_numbers = #tpu.dot_dimension_numbers<[1], [0], [0], [1], [0, 0, 1, 1], [], []>} : vector<8x8xbf16>, vector<8x128xbf16>, vector<8x128xf32> -> vector<8x128xf32>
    %c0_9 = arith.constant 0 : index
    %c0_10 = arith.constant 0 : index
    %12 = vector.load %arg5[%c0_9, %c0_10] : memref<8x1xf32, #tpu.memory_space<vmem>>, vector<8x1xf32>
    %13 = vector.broadcast %12 : vector<8x1xf32> to vector<8x128xf32>
    %14 = arith.addf %11, %13 : vector<8x128xf32>
    %15 = vector.extract_strided_slice %14 {offsets = [0, 0], sizes = [4, 128], strides = [1, 1]} : vector<8x128xf32> to vector<4x128xf32>
    %16 = vector.extract_strided_slice %14 {offsets = [4, 0], sizes = [4, 128], strides = [1, 1]} : vector<8x128xf32> to vector<4x128xf32>
    %c0_11 = arith.constant 0 : index
    %c0_12 = arith.constant 0 : index
    %17 = vector.load %arg6[%c0_11, %c0_12] : memref<16x4xbf16, #tpu.memory_space<vmem>>, vector<8x4xbf16>
    %c0_13 = arith.constant 0 : index
    %c0_14 = arith.constant 0 : index
    %18 = vector.load %arg7[%c0_13, %c0_14] : memref<16x1xf32, #tpu.memory_space<vmem>>, vector<8x1xf32>
    %cst_15 = arith.constant 0.000000e+00 : f32
    %19 = vector.broadcast %cst_15 : f32 to vector<4x128xf32>
    %20 = arith.maximumf %15, %19 : vector<4x128xf32>
    %21 = arith.truncf %20 : vector<4x128xf32> to vector<4x128xbf16>
    %cst_16 = arith.constant dense<0.000000e+00> : vector<8x128xf32>
    %22 = tpu.matmul %17, %21, %cst_16 {dimension_numbers = #tpu.dot_dimension_numbers<[1], [0], [0], [1], [0, 0, 1, 1], [], []>} : vector<8x4xbf16>, vector<4x128xbf16>, vector<8x128xf32> -> vector<8x128xf32>
    %23 = vector.broadcast %18 : vector<8x1xf32> to vector<8x128xf32>
    %24 = arith.addf %22, %23 : vector<8x128xf32>
    %25 = vector.extract_strided_slice %24 {offsets = [0, 0], sizes = [4, 128], strides = [1, 1]} : vector<8x128xf32> to vector<4x128xf32>
    %26 = vector.extract_strided_slice %24 {offsets = [4, 0], sizes = [4, 128], strides = [1, 1]} : vector<8x128xf32> to vector<4x128xf32>
    %c8 = arith.constant 8 : index
    %c0_17 = arith.constant 0 : index
    %27 = vector.load %arg6[%c8, %c0_17] : memref<16x4xbf16, #tpu.memory_space<vmem>>, vector<4x4xbf16>
    %c8_18 = arith.constant 8 : index
    %c0_19 = arith.constant 0 : index
    %28 = vector.load %arg7[%c8_18, %c0_19] : memref<16x1xf32, #tpu.memory_space<vmem>>, vector<4x1xf32>
    %cst_20 = arith.constant 0.000000e+00 : f32
    %29 = vector.broadcast %cst_20 : f32 to vector<4x128xf32>
    %30 = arith.maximumf %16, %29 : vector<4x128xf32>
    %31 = arith.truncf %30 : vector<4x128xf32> to vector<4x128xbf16>
    %cst_21 = arith.constant dense<0.000000e+00> : vector<4x128xf32>
    %32 = tpu.matmul %27, %31, %cst_21 {dimension_numbers = #tpu.dot_dimension_numbers<[1], [0], [0], [1], [0, 0, 1, 1], [], []>} : vector<4x4xbf16>, vector<4x128xbf16>, vector<4x128xf32> -> vector<4x128xf32>
    %33 = vector.broadcast %28 : vector<4x1xf32> to vector<4x128xf32>
    %34 = arith.addf %32, %33 : vector<4x128xf32>
    %35 = arith.addf %25, %16 : vector<4x128xf32>
    %36 = arith.addf %34, %15 : vector<4x128xf32>
    %c12 = arith.constant 12 : index
    %c0_22 = arith.constant 0 : index
    %37 = vector.load %arg6[%c12, %c0_22] : memref<16x4xbf16, #tpu.memory_space<vmem>>, vector<4x4xbf16>
    %c12_23 = arith.constant 12 : index
    %c0_24 = arith.constant 0 : index
    %38 = vector.load %arg7[%c12_23, %c0_24] : memref<16x1xf32, #tpu.memory_space<vmem>>, vector<4x1xf32>
    %cst_25 = arith.constant 0.000000e+00 : f32
    %39 = vector.broadcast %cst_25 : f32 to vector<4x128xf32>
    %40 = arith.maximumf %36, %39 : vector<4x128xf32>
    %41 = arith.truncf %40 : vector<4x128xf32> to vector<4x128xbf16>
    %cst_26 = arith.constant dense<0.000000e+00> : vector<4x128xf32>
    %42 = tpu.matmul %37, %41, %cst_26 {dimension_numbers = #tpu.dot_dimension_numbers<[1], [0], [0], [1], [0, 0, 1, 1], [], []>} : vector<4x4xbf16>, vector<4x128xbf16>, vector<4x128xf32> -> vector<4x128xf32>
    %43 = vector.broadcast %38 : vector<4x1xf32> to vector<4x128xf32>
    %44 = arith.addf %42, %43 : vector<4x128xf32>
    %45 = arith.addf %35, %44 : vector<4x128xf32>
    %46 = arith.addf %26, %35 : vector<4x128xf32>
    %47 = tpu.concatenate %35, %36, %45, %46 in 0 : vector<4x128xf32>, vector<4x128xf32>, vector<4x128xf32>, vector<4x128xf32> -> vector<16x128xf32>
    %c0_27 = arith.constant 0 : index
    %c0_28 = arith.constant 0 : index
    %c0_29 = arith.constant 0 : index
    %48 = vector.load %arg8[%c0_27, %c0_28, %c0_29] : memref<1x16x128xf32, #tpu.memory_space<vmem>>, vector<1x16x128xf32>
    %49 = vector.shape_cast %48 : vector<1x16x128xf32> to vector<16x128xf32>
    %50 = vector.shape_cast %47 : vector<16x128xf32> to vector<1x16x128xf32>
    tpu.vector_store %arg8[%c0_27, %c0_28, %c0_29], %50 {strides = array<i32>} : memref<1x16x128xf32, #tpu.memory_space<vmem>>, vector<1x16x128xf32>,
    return
  }
  func.func @transform_0(%arg0: i32, %arg1: i32) -> (i32, i32, i32) {
    %c0_i32 = arith.constant 0 : i32
    %c0_i32_0 = arith.constant 0 : i32
    return %arg0, %c0_i32, %arg1 : i32, i32, i32
  }
  func.func @transform_1(%arg0: i32, %arg1: i32) -> (i32, i32, i32) {
    %c0_i32 = arith.constant 0 : i32
    %c0_i32_0 = arith.constant 0 : i32
    return %arg0, %c0_i32, %arg1 : i32, i32, i32
  }
  func.func @transform_2(%arg0: i32, %arg1: i32) -> (i32, i32) {
    %c0_i32 = arith.constant 0 : i32
    %c0_i32_0 = arith.constant 0 : i32
    %c0_i32_1 = arith.constant 0 : i32
    return %c0_i32, %c0_i32_0 : i32, i32
  }
  func.func @transform_3(%arg0: i32, %arg1: i32) -> (i32, i32) {
    %c0_i32 = arith.constant 0 : i32
    %c0_i32_0 = arith.constant 0 : i32
    %c0_i32_1 = arith.constant 0 : i32
    return %c0_i32, %c0_i32_0 : i32, i32
  }
  func.func @transform_4(%arg0: i32, %arg1: i32) -> (i32, i32) {
    %c0_i32 = arith.constant 0 : i32
    %c0_i32_0 = arith.constant 0 : i32
    %c0_i32_1 = arith.constant 0 : i32
    return %c0_i32, %c0_i32_0 : i32, i32
  }
  func.func @transform_5(%arg0: i32, %arg1: i32) -> (i32, i32) {
    %c0_i32 = arith.constant 0 : i32
    %c0_i32_0 = arith.constant 0 : i32
    %c0_i32_1 = arith.constant 0 : i32
    return %c0_i32, %c0_i32_0 : i32, i32
  }
  func.func @transform_6(%arg0: i32, %arg1: i32) -> (i32, i32, i32) {
    %c0_i32 = arith.constant 0 : i32
    %c0_i32_0 = arith.constant 0 : i32
    return %arg0, %c0_i32, %arg1 : i32, i32, i32
  }
}

</mosaic_0001>

<llo_original>
// kernel: tpu_custom_call.1
$region0: #{tpu_custom_call.1}
  #allocation0 [shape = 'u32[]', space=smem, size = 0x4, offset = 0x4, fixed_abs, tag = 'smem constant byte address 0x4 - core index']
  #allocation1 [shape = 'u32[72,128]{1,0:T(1,128)}', space=vmem, size = 0x9000, scoped, tag = 'internal scratch']
  %s0 = inlined_call_operand.vmem [shape: f32[2,4,256], index: 0, kind: input, shape index: {}]
  %s1 = inlined_call_operand.vmem [shape: f32[2,4,256], index: 1, kind: input, shape index: {}]
  %s2 = inlined_call_operand.hbm [shape: bf16[8,8], index: 2, kind: input, shape index: {}]
  %s3 = inlined_call_operand.vmem [shape: f32[8,1], index: 3, kind: input, shape index: {}]
  %s4 = inlined_call_operand.vmem [shape: bf16[16,4], index: 4, kind: input, shape index: {}]
  %s5 = inlined_call_operand.vmem [shape: f32[16,1], index: 5, kind: input, shape index: {}]
  %s6 = inlined_call_operand.hbm [shape: f32[2,16,256], index: 6, kind: output, shape index: {}]
  %s7 = sld [smem:[#allocation0]]
  $region61: #{tpu_custom_call.1} parent=0
    _
  %s9 = ssub.s32 1, %s7
  %s10 = scalar_select 0, %s9, %s7
  $region1: #{tpu_custom_call.1} parent=0
    #allocation2 [shape = 'u8[2048]{0}', space=vmem, size = 0x800, scoped, tag = 'input window, operand 2, single buffered']
    #allocation3 [shape = 's32[2]{0}', space=sflag, size = 0x8, scoped, tag = 'scoped memory for tpu_custom_call.1']
    #allocation4 [shape = 's32[2]{0}', space=sflag, size = 0x8, scoped, tag = 'scoped memory for tpu_custom_call.1']
    #allocation5 [shape = 'u8[16384]{0}', space=vmem, size = 0x4000, scoped, tag = 'output window, operand 0']
    %11 = vsyncpa [#allocation3], 0
    %12 = vsyncpa [#allocation4], 0
    %s13 = scalar_lea.sflag [#allocation4], 1
    %14 = vsyncpa %s13, 0
    loop: start=0, step=1, limit=6
    $region2: #{tpu_custom_call.1} parent=1 // loop_pre_header
      _
    $region3: #{tpu_custom_call.1} parent=1 // loop_header
      %s16 = sphi 0, %s20
      %p17 = scmp.ge.s32.totalorder %s16, 6
      %s23 = sphi 0, %s35
      %s24 = sphi 0, %s31
      %s25 = sphi 0, %s23
      %s26 = sphi 0, %s24
      %s27 = sphi 0, %s25
      %s28 = sphi 0, %s26
      %s40 = sphi 0, %s42
      %s43 = sphi 0, %s40
      %s44 = sphi 0, %s43
      %s60 = sphi 0, %s44
      %s68 = sphi 0, %s70
      %s71 = sphi 0, %s68
      %s72 = sphi 0, %s71
      %s88 = sphi 0, %s72
      %s92 = sphi 0, %s92
      %s94 = sphi 0, %s92
      %s95 = sphi 0, %s94
      %s109 = sphi 0, %s95
      %s113 = sphi 0, %s113
      %s115 = sphi 0, %s113
      %s116 = sphi 0, %s115
      %s130 = sphi 0, %s116
      %s134 = sphi 0, %s134
      %s136 = sphi 0, %s134
      %s137 = sphi 0, %s136
      %s151 = sphi 0, %s137
      %s155 = sphi 0, %s155
      %s157 = sphi 0, %s155
      %s158 = sphi 0, %s157
      %s172 = sphi 0, %s158
      %s180 = sphi 0, %s182
      %s183 = sphi 0, %s180
      %s184 = sphi 0, %s183
      %s200 = sphi 0, %s184
    $region4: #{tpu_custom_call.1} parent=1 // loop_header_branch
      %19 = sbr.rel (%p17) target = $region8
    $region5: #{tpu_custom_call.1} parent=1 // loop_body
      %s21 = ssub.s32 %s16, 1
      %s22 = ssub.s32 %s16, 2
      %s29 = sadd.s32 1, %s24
      %p30 = scmp.ge.s32.totalorder %s29, 2
      %s31 = scalar_select %p30, 0, %s29
      %s32 = sadd.s32 1, %s23
      %s33 = scalar_select %p30, %s32, %s23
      %p34 = scmp.ge.s32.totalorder %s33, 2
      %s35 = scalar_select %p34, 0, %s33
      %s36 = ssub.s32 %s23, %s35
      %s37 = ssub.s32 %s24, %s31
      %s38 = sor.u32 %s36, %s37
      %p39 = scmp.eq.s32.totalorder %s38, 0
      %s41 = sadd.s32 %s40, 1
      %s42 = scalar_select %p39, %s40, %s41
      %p45 = pneg %p39
      %p46 = scmp.eq.s32.totalorder %s16, 3
      %p47 = por %p45, %p46
      %p48 = scmp.ne.s32.totalorder %s40, %s43
      %p49 = scmp.eq.s32.totalorder %s16, 0
      %p50 = por %p48, %p49
      %p51 = scmp.ne.s32.totalorder %s40, %s43
      %p52 = scmp.eq.s32.totalorder %s21, 3
      %p53 = por %p51, %p52
      %p54 = scmp.ne.s32.totalorder %s43, %s44
      %p55 = scmp.eq.s32.totalorder %s21, 0
      %p56 = por %p54, %p55
      %p57 = scmp.ne.s32.totalorder %s43, %s44
      %p58 = scmp.eq.s32.totalorder %s22, 3
      %p59 = por %p57, %p58
      %p61 = scmp.ne.s32.totalorder %s44, %s60
      %p62 = scmp.eq.s32.totalorder %s22, 0
      %p63 = por %p61, %p62
      %s64 = ssub.s32 %s23, %s35
      %s65 = ssub.s32 %s24, %s31
      %s66 = sor.u32 %s64, %s65
      %p67 = scmp.eq.s32.totalorder %s66, 0
      %s69 = sadd.s32 %s68, 1
      %s70 = scalar_select %p67, %s68, %s69
      %p73 = pneg %p67
      %p74 = scmp.eq.s32.totalorder %s16, 3
      %p75 = por %p73, %p74
      %p76 = scmp.ne.s32.totalorder %s68, %s71
      %p77 = scmp.eq.s32.totalorder %s16, 0
      %p78 = por %p76, %p77
      %p79 = scmp.ne.s32.totalorder %s68, %s71
      %p80 = scmp.eq.s32.totalorder %s21, 3
      %p81 = por %p79, %p80
      %p82 = scmp.ne.s32.totalorder %s71, %s72
      %p83 = scmp.eq.s32.totalorder %s21, 0
      %p84 = por %p82, %p83
      %p85 = scmp.ne.s32.totalorder %s71, %s72
      %p86 = scmp.eq.s32.totalorder %s22, 3
      %p87 = por %p85, %p86
      %p89 = scmp.ne.s32.totalorder %s72, %s88
      %p90 = scmp.eq.s32.totalorder %s22, 0
      %p91 = por %p89, %p90
      %s93 = sadd.s32 %s92, 1
      %p96 = scmp.eq.s32.totalorder %s16, 3
      %p97 = scmp.ne.s32.totalorder %s92, %s94
      %p98 = scmp.eq.s32.totalorder %s16, 0
      %p99 = por %p97, %p98
      %p100 = scmp.ne.s32.totalorder %s92, %s94
      %p101 = scmp.eq.s32.totalorder %s21, 3
      %p102 = por %p100, %p101
      %p103 = scmp.ne.s32.totalorder %s94, %s95
      %p104 = scmp.eq.s32.totalorder %s21, 0
      %p105 = por %p103, %p104
      %p106 = scmp.ne.s32.totalorder %s94, %s95
      %p107 = scmp.eq.s32.totalorder %s22, 3
      %p108 = por %p106, %p107
      %p110 = scmp.ne.s32.totalorder %s95, %s109
      %p111 = scmp.eq.s32.totalorder %s22, 0
      %p112 = por %p110, %p111
      %s114 = sadd.s32 %s113, 1
      %p117 = scmp.eq.s32.totalorder %s16, 3
      %p118 = scmp.ne.s32.totalorder %s113, %s115
      %p119 = scmp.eq.s32.totalorder %s16, 0
      %p120 = por %p118, %p119
      %p121 = scmp.ne.s32.totalorder %s113, %s115
      %p122 = scmp.eq.s32.totalorder %s21, 3
      %p123 = por %p121, %p122
      %p124 = scmp.ne.s32.totalorder %s115, %s116
      %p125 = scmp.eq.s32.totalorder %s21, 0
      %p126 = por %p124, %p125
      %p127 = scmp.ne.s32.totalorder %s115, %s116
      %p128 = scmp.eq.s32.totalorder %s22, 3
      %p129 = por %p127, %p128
      %p131 = scmp.ne.s32.totalorder %s116, %s130
      %p132 = scmp.eq.s32.totalorder %s22, 0
      %p133 = por %p131, %p132
      %s135 = sadd.s32 %s134, 1
      %p138 = scmp.eq.s32.totalorder %s16, 3
      %p139 = scmp.ne.s32.totalorder %s134, %s136
      %p140 = scmp.eq.s32.totalorder %s16, 0
      %p141 = por %p139, %p140
      %p142 = scmp.ne.s32.totalorder %s134, %s136
      %p143 = scmp.eq.s32.totalorder %s21, 3
      %p144 = por %p142, %p143
      %p145 = scmp.ne.s32.totalorder %s136, %s137
      %p146 = scmp.eq.s32.totalorder %s21, 0
      %p147 = por %p145, %p146
      %p148 = scmp.ne.s32.totalorder %s136, %s137
      %p149 = scmp.eq.s32.totalorder %s22, 3
      %p150 = por %p148, %p149
      %p152 = scmp.ne.s32.totalorder %s137, %s151
      %p153 = scmp.eq.s32.totalorder %s22, 0
      %p154 = por %p152, %p153
      %s156 = sadd.s32 %s155, 1
      %p159 = scmp.eq.s32.totalorder %s16, 3
      %p160 = scmp.ne.s32.totalorder %s155, %s157
      %p161 = scmp.eq.s32.totalorder %s16, 0
      %p162 = por %p160, %p161
      %p163 = scmp.ne.s32.totalorder %s155, %s157
      %p164 = scmp.eq.s32.totalorder %s21, 3
      %p165 = por %p163, %p164
      %p166 = scmp.ne.s32.totalorder %s157, %s158
      %p167 = scmp.eq.s32.totalorder %s21, 0
      %p168 = por %p166, %p167
      %p169 = scmp.ne.s32.totalorder %s157, %s158
      %p170 = scmp.eq.s32.totalorder %s22, 3
      %p171 = por %p169, %p170
      %p173 = scmp.ne.s32.totalorder %s158, %s172
      %p174 = scmp.eq.s32.totalorder %s22, 0
      %p175 = por %p173, %p174
      %s176 = ssub.s32 %s23, %s35
      %s177 = ssub.s32 %s24, %s31
      %s178 = sor.u32 %s176, %s177
      %p179 = scmp.eq.s32.totalorder %s178, 0
      %s181 = sadd.s32 %s180, 1
      %s182 = scalar_select %p179, %s180, %s181
      %p185 = pneg %p179
      %p186 = scmp.eq.s32.totalorder %s16, 3
      %p187 = por %p185, %p186
      %p188 = scmp.ne.s32.totalorder %s180, %s183
      %p189 = scmp.eq.s32.totalorder %s16, 0
      %p190 = por %p188, %p189
      %p191 = scmp.ne.s32.totalorder %s180, %s183
      %p192 = scmp.eq.s32.totalorder %s21, 3
      %p193 = por %p191, %p192
      %p194 = scmp.ne.s32.totalorder %s183, %s184
      %p195 = scmp.eq.s32.totalorder %s21, 0
      %p196 = por %p194, %p195
      %p197 = scmp.ne.s32.totalorder %s183, %s184
      %p198 = scmp.eq.s32.totalorder %s22, 3
      %p199 = por %p197, %p198
      %p201 = scmp.ne.s32.totalorder %s184, %s200
      %p202 = scmp.eq.s32.totalorder %s22, 0
      %p203 = por %p201, %p202
      %p204 = scmp.le.s32.totalorder 1, %s16
      %p205 = scmp.lt.s32.totalorder %s16, 5
      %p206 = pnand %p204, %p205
      %p207 = pneg %p206
      // Predicated region
      $region9: #{tpu_custom_call.1} parent=5 // pred_check
        _
      $region10: #{tpu_custom_call.1} parent=5 // pred_check_branch
        %209 = sbr.rel (%p206) target = $region12
      $region11: #{tpu_custom_call.1} parent=5 // pred_region
        %s210 = ssub.s32 %s16, 1
        // Predicated region
        $region13: #{tpu_custom_call.1} parent=11 // pred_check
          %p211 = pneg %p105
        $region14: #{tpu_custom_call.1} parent=11 // pred_check_branch
          %213 = sbr.rel (%p211) target = $region16
        $region15: #{tpu_custom_call.1} parent=11 // pred_region
          %215 = vsyncadd [#allocation3], 0
          %s217 = sshll.u32 %s2, 4
          %s218 = int_to_ptr.hbm [resolvable:$true] %s217
          %s219 = sshll.u32 [#allocation2], 4
          %s220 = int_to_ptr.vmem [resolvable:$true] %s219
          %222 = dma.hbm_to_vmem [thread:$0]  %s218, 64, %s220, [#allocation3]
        $region16: #{tpu_custom_call.1} parent=11 // pred_fallthru
          _
        // Predicated region
        $region17: #{tpu_custom_call.1} parent=11 // pred_check
          %p223 = pneg %p126
        $region18: #{tpu_custom_call.1} parent=11 // pred_check_branch
          %225 = sbr.rel (%p223) target = $region20
        $region19: #{tpu_custom_call.1} parent=11 // pred_region
          _
        $region20: #{tpu_custom_call.1} parent=11 // pred_fallthru
          _
        // Predicated region
        $region21: #{tpu_custom_call.1} parent=11 // pred_check
          %p226 = pneg %p147
        $region22: #{tpu_custom_call.1} parent=11 // pred_check_branch
          %228 = sbr.rel (%p226) target = $region24
        $region23: #{tpu_custom_call.1} parent=11 // pred_region
          _
        $region24: #{tpu_custom_call.1} parent=11 // pred_fallthru
          _
        // Predicated region
        $region25: #{tpu_custom_call.1} parent=11 // pred_check
          %p229 = pneg %p168
        $region26: #{tpu_custom_call.1} parent=11 // pred_check_branch
          %231 = sbr.rel (%p229) target = $region28
        $region27: #{tpu_custom_call.1} parent=11 // pred_region
          _
        $region28: #{tpu_custom_call.1} parent=11 // pred_fallthru
          _
      $region12: #{tpu_custom_call.1} parent=5 // pred_fallthru
        _
      %p232 = scmp.lt.s32.totalorder %s16, 4
      // Predicated region
      $region29: #{tpu_custom_call.1} parent=5 // pred_check
        %p233 = pneg %p232
      $region30: #{tpu_custom_call.1} parent=5 // pred_check_branch
        %235 = sbr.rel (%p233) target = $region32
      $region31: #{tpu_custom_call.1} parent=5 // pred_region
        // Predicated region
        $region33: #{tpu_custom_call.1} parent=31 // pred_check
          %p236 = pneg %p50
        $region34: #{tpu_custom_call.1} parent=31 // pred_check_branch
          %238 = sbr.rel (%p236) target = $region36
        $region35: #{tpu_custom_call.1} parent=31 // pred_region
          %p239 = scmp.lt.s32.totalorder %s23, 1
          %s240 = scalar_select %p239, %s23, 1
          %p241 = scmp.lt.s32.totalorder %s24, 1
          %s242 = scalar_select %p241, %s24, 1
          %s243 = smul.addr %s240, 2
          %s244 = sadd.s32 %s242, %s243
          %s245 = smul.addr %s244, 4
          %s246 = scalar_lea.vmem %s0, %s245
        $region36: #{tpu_custom_call.1} parent=31 // pred_fallthru
          _
        // Predicated region
        $region37: #{tpu_custom_call.1} parent=31 // pred_check
          %p247 = pneg %p78
        $region38: #{tpu_custom_call.1} parent=31 // pred_check_branch
          %249 = sbr.rel (%p247) target = $region40
        $region39: #{tpu_custom_call.1} parent=31 // pred_region
          %p250 = scmp.lt.s32.totalorder %s23, 1
          %s251 = scalar_select %p250, %s23, 1
          %p252 = scmp.lt.s32.totalorder %s24, 1
          %s253 = scalar_select %p252, %s24, 1
          %s254 = smul.addr %s251, 2
          %s255 = sadd.s32 %s253, %s254
          %s256 = smul.addr %s255, 4
          %s257 = scalar_lea.vmem %s1, %s256
        $region40: #{tpu_custom_call.1} parent=31 // pred_fallthru
          _
      $region32: #{tpu_custom_call.1} parent=5 // pred_fallthru
        _
      %p258 = scmp.le.s32.totalorder 1, %s16
      %p259 = scmp.lt.s32.totalorder %s16, 5
      %p260 = pnand %p258, %p259
      %p261 = pneg %p260
      // Predicated region
      $region41: #{tpu_custom_call.1} parent=5 // pred_check
        _
      $region42: #{tpu_custom_call.1} parent=5 // pred_check_branch
        %263 = sbr.rel (%p260) target = $region44
      $region43: #{tpu_custom_call.1} parent=5 // pred_region
        %s264 = ssub.s32 %s16, 1
        // Predicated region
        $region45: #{tpu_custom_call.1} parent=43 // pred_check
          %p265 = pneg %p105
        $region46: #{tpu_custom_call.1} parent=43 // pred_check_branch
          %267 = sbr.rel (%p265) target = $region48
        $region47: #{tpu_custom_call.1} parent=43 // pred_region
          %269 = dma.done [#allocation3], 64
        $region48: #{tpu_custom_call.1} parent=43 // pred_fallthru
          _
        %p270 = scmp.lt.s32.totalorder %s25, 1
        %s271 = scalar_select %p270, %s25, 1
        %p272 = scmp.lt.s32.totalorder %s26, 1
        %s273 = scalar_select %p272, %s26, 1
        %s274 = smul.addr %s271, 2
        %s275 = sadd.s32 %s273, %s274
        %s276 = smul.addr %s275, 4
        %s277 = scalar_lea.vmem %s0, %s276
        %p278 = pneg %p56
        %p279 = pneg %p53
        %p280 = scmp.lt.s32.totalorder %s25, 1
        %s281 = scalar_select %p280, %s25, 1
        %p282 = scmp.lt.s32.totalorder %s26, 1
        %s283 = scalar_select %p282, %s26, 1
        %s284 = smul.addr %s281, 2
        %s285 = sadd.s32 %s283, %s284
        %s286 = smul.addr %s285, 4
        %s287 = scalar_lea.vmem %s1, %s286
        %p288 = pneg %p84
        %p289 = pneg %p81
        %p290 = pneg %p105
        %p291 = pneg %p102
        %p292 = pneg %p126
        %p293 = pneg %p123
        %p294 = pneg %p147
        %p295 = pneg %p144
        %p296 = pneg %p168
        %p297 = pneg %p165
        %p298 = pneg %p196
        %p299 = pneg %p193
        %s300 = sand.u32 %s183, 1
        %s301 = scalar_lea.sflag [#allocation4], %s300
        %s302 = sand.u32 %s183, 1
        %s303 = smul.addr %s302, 16
        %s304 = scalar_lea.vmem [#allocation5], %s303
        %p305 = scmp.lt.s32.totalorder %s25, 1
        %s306 = scalar_select %p305, %s25, 1
        %p307 = scmp.lt.s32.totalorder %s26, 1
        %s308 = scalar_select %p307, %s26, 1
        %s309 = smul.addr %s306, 2
        %s310 = sadd.s32 %s308, %s309
        %s311 = smul.addr %s310, 4
        %s312 = scalar_lea.vmem %s0, %s311
        %p313 = scmp.lt.s32.totalorder %s25, 1
        %s314 = scalar_select %p313, %s25, 1
        %p315 = scmp.lt.s32.totalorder %s26, 1
        %s316 = scalar_select %p315, %s26, 1
        %s317 = smul.addr %s314, 2
        %s318 = sadd.s32 %s316, %s317
        %s319 = smul.addr %s318, 4
        %s320 = scalar_lea.vmem %s1, %s319
        %v322 = vld [vmem:[%s312] sm:$0xf]
        %v323 = vmax.f32 %v322, 0.0
        %v324 = vld [vmem:[%s320] sm:$0xf]
        %v325 = vmax.f32 %v324, 0.0
        %v327 = vrot.slane %v325, 4
        %vm329 = vcmask 1043456
        %v330 = vsel %vm329, %v323, %v327
        %v331 = vpack.c.bf16 %v330, %v330
        %v332 = vld [vmem:[#allocation2] sm:$0xf]
        %v333 = vld [vmem:[%s3] sm:$0xff]
        %335 = vset.pattern.permute.xlu0 0
        %336 = vperm.xlu0 %335, %v333
        %v337 = vpop.permute.xlu0 %336
        %vm339 = vcmask 64512
        %v341 = vsel %vm339, %v332, 0
        %v344 = vsel %vm329, %v331, 0
        %346 = vmatpush.bf16.msra.mxu0 0
        %347 = vmatpush.bf16.msra.mxu0 0
        %348 = vmatpush.bf16.msra.mxu0 0
        %349 = vmatpush.bf16.msra.mxu0 0
        %350 = vmatpush.bf16.msra.mxu0 0
        %351 = vmatpush.bf16.msra.mxu0 0
        %352 = vmatpush.bf16.msra.mxu0 0
        %353 = vmatpush.bf16.msra.mxu0 %v344
        %354 = vmatmul.bf16.gmra.mxu0 %v341
        %v355 = vpop.f32.mrf.mxu0
        %v356 = vadd.f32 %v337, %v355
        %v357 = vpop.f32.mrf.mxu0
        %358 = vdwg.mxu0
        %v359 = vld [vmem:[%s4] sm:$0xf]
        %v360 = vld [vmem:[%s5] sm:$0xff]
        %v361 = vmax.f32 %v356, 0.0
        %v362 = vpack.c.bf16 %v361, %v361
        %364 = vset.pattern.permute.xlu0 0
        %365 = vperm.xlu0 %364, %v360
        %v366 = vpop.permute.xlu0 %365
        %vm368 = vcmask 31744
        %v370 = vsel %vm368, %v359, 0
        %vm372 = vcmask 1041408
        %v374 = vsel %vm372, %v362, 0
        %376 = vmatpush.bf16.msra.mxu0 0
        %377 = vmatpush.bf16.msra.mxu0 0
        %378 = vmatpush.bf16.msra.mxu0 0
        %379 = vmatpush.bf16.msra.mxu0 0
        %380 = vmatpush.bf16.msra.mxu0 0
        %381 = vmatpush.bf16.msra.mxu0 0
        %382 = vmatpush.bf16.msra.mxu0 0
        %383 = vmatpush.bf16.msra.mxu0 %v374
        %384 = vmatmul.bf16.gmra.mxu0 %v370
        %v385 = vpop.f32.mrf.mxu0
        %v386 = vadd.f32 %v366, %v385
        %v387 = vpop.f32.mrf.mxu0
        %388 = vdwg.mxu0
        %v389 = vld [vmem:[%s4 + $0x4] sm:$0x3]
        %v390 = vld [vmem:[%s5 + $0x8] sm:$0xf]
        %392 = vset.pattern.permute.xlu0 0
        %393 = vperm.xlu0 %392, %v390
        %v394 = vpop.permute.xlu0 %393
        %v397 = vrot.slane %v362, 2
        %v399 = vsel %vm368, %v389, 0
        %v402 = vsel %vm372, %v397, 0
        %404 = vmatpush.bf16.msra.mxu0 0
        %405 = vmatpush.bf16.msra.mxu0 0
        %406 = vmatpush.bf16.msra.mxu0 0
        %407 = vmatpush.bf16.msra.mxu0 0
        %408 = vmatpush.bf16.msra.mxu0 0
        %409 = vmatpush.bf16.msra.mxu0 0
        %410 = vmatpush.bf16.msra.mxu0 0
        %411 = vmatpush.bf16.msra.mxu0 %v402
        %412 = vmatmul.bf16.gmra.mxu0 %v399
        %v413 = vpop.f32.mrf.mxu0
        %v414 = vadd.f32 %v394, %v413
        %v415 = vpop.f32.mrf.mxu0
        %416 = vdwg.mxu0
        %v418 = vrot.slane %v356, 4
        %v420 = vadd.f32 %v386, %v418
        %v421 = vadd.f32 %v414, %v356
        %v422 = vld [vmem:[%s4 + $0x4] sm:$0xc]
        %v423 = vld [vmem:[%s5 + $0xc] sm:$0xf]
        %v424 = vmax.f32 %v421, 0.0
        %v425 = vpack.c.bf16 %v424, %v424
        %427 = vset.pattern.permute.xlu0 0
        %428 = vperm.xlu0 %427, %v423
        %v429 = vpop.permute.xlu0 %428
        %v432 = vunpack.c.l.b16 %v422
        %v433 = vpack.c.b16 %v432, %v432
        %v434 = vrot.slane %v433, 2
        %v436 = vsel %vm368, %v434, 0
        %v439 = vsel %vm372, %v425, 0
        %441 = vmatpush.bf16.msra.mxu0 0
        %442 = vmatpush.bf16.msra.mxu0 0
        %443 = vmatpush.bf16.msra.mxu0 0
        %444 = vmatpush.bf16.msra.mxu0 0
        %445 = vmatpush.bf16.msra.mxu0 0
        %446 = vmatpush.bf16.msra.mxu0 0
        %447 = vmatpush.bf16.msra.mxu0 0
        %448 = vmatpush.bf16.msra.mxu0 %v439
        %449 = vmatmul.bf16.gmra.mxu0 %v436
        %v450 = vpop.f32.mrf.mxu0
        %v451 = vadd.f32 %v429, %v450
        %v452 = vpop.f32.mrf.mxu0
        %453 = vdwg.mxu0
        %v454 = vadd.f32 %v420, %v451
        %v456 = vrot.slane %v420, 4
        %v458 = vadd.f32 %v386, %v456
        %v460 = vrot.slane %v421, 4
        %v462 = vsel %vm329, %v420, %v460
        %v463 = vsel %vm329, %v454, %v458
        %464 = vst [vmem:[%s304] sm:$0xff] %v462
        %465 = vst [vmem:[%s304 + $0x8] sm:$0xff] %v463
        %s466 = sand.u32 %s183, 1
        %s467 = scalar_lea.sflag [#allocation4], %s466
        %s468 = sand.u32 %s183, 1
        %s469 = smul.addr %s468, 16
        %s470 = scalar_lea.vmem [#allocation5], %s469
        // Predicated region
        $region49: #{tpu_custom_call.1} parent=43 // pred_check
          %p471 = pneg %p193
        $region50: #{tpu_custom_call.1} parent=43 // pred_check_branch
          %473 = sbr.rel (%p471) target = $region52
        $region51: #{tpu_custom_call.1} parent=43 // pred_region
          %475 = vsyncadd %s467, 0
          %s476 = smul.addr %s25, 4
          %s477 = sadd.s32 %s26, %s476
          %s478 = smul.addr %s477, 8
          %s479 = scalar_lea.hbm %s6, %s478
          %s480 = sshll.u32 %s470, 4
          %s481 = int_to_ptr.vmem [resolvable:$true] %s480
          %s482 = sshll.u32 %s479, 4
          %s483 = int_to_ptr.hbm [resolvable:$true] %s482
          %488 = dma.vmem_to_hbm [thread:$0]  %s481, 256, %s483, %s467, 128, 256, 8
        $region52: #{tpu_custom_call.1} parent=43 // pred_fallthru
          _
      $region44: #{tpu_custom_call.1} parent=5 // pred_fallthru
        _
      %p489 = scmp.le.s32.totalorder 2, %s16
      // Predicated region
      $region53: #{tpu_custom_call.1} parent=5 // pred_check
        %p490 = pneg %p489
      $region54: #{tpu_custom_call.1} parent=5 // pred_check_branch
        %492 = sbr.rel (%p490) target = $region56
      $region55: #{tpu_custom_call.1} parent=5 // pred_region
        %s493 = ssub.s32 %s16, 2
        // Predicated region
        $region57: #{tpu_custom_call.1} parent=55 // pred_check
          %p494 = pneg %p199
        $region58: #{tpu_custom_call.1} parent=55 // pred_check_branch
          %496 = sbr.rel (%p494) target = $region60
        $region59: #{tpu_custom_call.1} parent=55 // pred_region
          %s497 = sand.u32 %s184, 1
          %s498 = scalar_lea.sflag [#allocation4], %s497
          %s499 = sand.u32 %s184, 1
          %s500 = smul.addr %s499, 16
          %s501 = scalar_lea.vmem [#allocation5], %s500
          %503 = dma.done %s498, 256
        $region60: #{tpu_custom_call.1} parent=55 // pred_fallthru
          _
      $region56: #{tpu_custom_call.1} parent=5 // pred_fallthru
        _
    $region6: #{tpu_custom_call.1} parent=1 // loop_footer
      %s20 = sadd.s32 1, %s16
    $region7: #{tpu_custom_call.1} parent=1 // loop_footer_branch
      %15 = sbr.rel target = $region3
    $region8: #{tpu_custom_call.1} parent=1 // loop_exit
      _
    %504 = vsyncpa [#allocation3], 1
    %s505 = scalar_lea.sflag [#allocation3], 1
    %506 = vsyncpa %s505, 1
    %507 = vsyncpa [#allocation4], 1
    %s508 = scalar_lea.sflag [#allocation4], 1
    %509 = vsyncpa %s508, 1

</llo_original>
